<compile_context>
chip_gen: v6e
topology: v6e:2x2x1
jax: 0.10.0
libtpu: 0.0.40
codegen_flags: <defaults>
</compile_context>

<pallas_src>
import jax
import jax.numpy as jnp
from jax.experimental import pallas as pl
from jax.experimental.pallas import tpu as pltpu

# ---- static problem configuration (small, consistent with the module) ------
N, H, W = 2, 8, 8
PLANE = 8
EXPANSION = 4
CIN = PLANE * EXPANSION        # identity path requires in_plane == plane*4
COUT = PLANE * EXPANSION
ATROUS = 1
PAD = ATROUS                   # conv2 padding == dilation
EPS = 1e-5                     # BatchNorm eps (PyTorch default)
NHW = N * H * W                # 128 -> exactly one vreg lane width
K2 = 9 * PLANE                 # im2col contraction size for conv2 (72)

# Row offsets inside the packed bf16 weight slab (16-row = bf16-vreg aligned).
W1_ROW, W2_ROW, W3_ROW = 0, 16, 32
WSLAB_ROWS = 64
BSLAB_ROWS = 2 * PLANE + COUT  # 48


def bottleneck_kernel(x_ref, w_ref, b_ref, m_ref, o_ref, p_ref):
    x = x_ref[...]                                             # (CIN, NHW) f32

    # ---- conv1: 1x1 conv (BN scale folded into w1), bias, ReLU -------------
    w1 = w_ref[W1_ROW:W1_ROW + PLANE, 0:CIN]                   # (PLANE, CIN) bf16
    o1 = jnp.dot(w1, x.astype(jnp.bfloat16),
                 preferred_element_type=jnp.float32)
    o1 = jnp.maximum(o1 + b_ref[0:PLANE, :], 0.0)              # (PLANE, NHW) f32

    # ---- conv2: 3x3 dilated conv as 9 lane-rolled taps -> one K=72 matmul --
    # Taps are written to a sublane-aligned f32 scratch; boundary handling is
    # a single precomputed-mask multiply (no in-kernel iota/compare/select).
    t = 0
    for kh in range(3):
        for kw in range(3):
            s = (kh - 1) * ATROUS * W + (kw - 1) * ATROUS      # lane offset
            tap = o1 if s == 0 else pltpu.roll(o1, shift=(-s) % NHW, axis=1)
            p_ref[t * PLANE:(t + 1) * PLANE, :] = tap
            t += 1
    patches = (p_ref[...] * m_ref[...]).astype(jnp.bfloat16)   # (72, NHW)
    w2 = w_ref[W2_ROW:W2_ROW + PLANE, 0:K2]                    # (PLANE, 72) bf16
    o2 = jnp.dot(w2, patches, preferred_element_type=jnp.float32)
    o2 = jnp.maximum(o2 + b_ref[PLANE:2 * PLANE, :], 0.0)      # (PLANE, NHW) f32

    # ---- conv3: 1x1 conv, folded BN, NO ReLU, then residual add ------------
    w3 = w_ref[W3_ROW:W3_ROW + COUT, 0:PLANE]                  # (COUT, PLANE) bf16
    o3 = jnp.dot(w3, o2.astype(jnp.bfloat16),
                 preferred_element_type=jnp.float32)
    o_ref[...] = o3 + b_ref[2 * PLANE:2 * PLANE + COUT, :] + x # (COUT, NHW) f32


def _bn_scale_shift(conv_bias, gamma, beta, mean, var):
    """Inference BatchNorm + conv bias -> per-channel scale s and shift b."""
    s = gamma / jnp.sqrt(var + EPS)
    b = (conv_bias - mean) * s + beta
    return s.astype(jnp.float32), b.astype(jnp.float32)


def make_tap_mask():
    """Static (9*PLANE, NHW) validity mask for the dilated 3x3 taps."""
    lane = jnp.arange(NHW)
    h_idx = (lane // W) % H
    w_idx = lane % W
    rows = []
    for kh in range(3):
        for kw in range(3):
            dh = (kh - 1) * ATROUS
            dw = (kw - 1) * ATROUS
            valid = ((h_idx + dh >= 0) & (h_idx + dh < H) &
                     (w_idx + dw >= 0) & (w_idx + dw < W))
            rows.append(jnp.broadcast_to(valid.astype(jnp.float32)[None, :],
                                         (PLANE, NHW)))
    return jnp.concatenate(rows, axis=0)                       # (72, NHW) f32


def bottleneck_forward(x_nchw, wslab, bslab, mask):
    # NCHW -> channel-major (C, N*H*W): lane axis = flattened batch*spatial.
    x_cm = jnp.transpose(x_nchw, (1, 0, 2, 3)).reshape(CIN, NHW)
    x_cm = x_cm.astype(jnp.float32)
    out_cm = pl.pallas_call(
        bottleneck_kernel,
        out_shape=jax.ShapeDtypeStruct((COUT, NHW), jnp.float32),
        in_specs=[pl.BlockSpec(memory_space=pltpu.MemorySpace.VMEM)] * 4,
        out_specs=pl.BlockSpec(memory_space=pltpu.MemorySpace.VMEM),
        scratch_shapes=[pltpu.VMEM((K2, NHW), jnp.float32)],
    )(x_cm, wslab, bslab, mask)
    # (COUT, N*H*W) -> NCHW
    return jnp.transpose(out_cm.reshape(COUT, N, H, W), (1, 0, 2, 3))


def make_params(key):
    ks = jax.random.split(key, 16)
    # conv weights in PyTorch layout (out, in, kh, kw)
    w1_pt = 0.1 * jax.random.normal(ks[0], (PLANE, CIN, 1, 1), jnp.float32)
    w2_pt = 0.1 * jax.random.normal(ks[1], (PLANE, PLANE, 3, 3), jnp.float32)
    w3_pt = 0.1 * jax.random.normal(ks[2], (COUT, PLANE, 1, 1), jnp.float32)
    b1c = 0.05 * jax.random.normal(ks[3], (PLANE,), jnp.float32)
    b2c = 0.05 * jax.random.normal(ks[4], (PLANE,), jnp.float32)
    b3c = 0.05 * jax.random.normal(ks[5], (COUT,), jnp.float32)
    # BN parameters (inference / running stats)
    g1 = 1.0 + 0.1 * jax.random.normal(ks[6], (PLANE,), jnp.float32)
    g2 = 1.0 + 0.1 * jax.random.normal(ks[7], (PLANE,), jnp.float32)
    g3 = 1.0 + 0.1 * jax.random.normal(ks[8], (COUT,), jnp.float32)
    be1 = 0.1 * jax.random.normal(ks[9], (PLANE,), jnp.float32)
    be2 = 0.1 * jax.random.normal(ks[10], (PLANE,), jnp.float32)
    be3 = 0.1 * jax.random.normal(ks[11], (COUT,), jnp.float32)
    m1 = 0.1 * jax.random.normal(ks[12], (PLANE,), jnp.float32)
    m2 = 0.1 * jax.random.normal(ks[13], (PLANE,), jnp.float32)
    m3 = 0.1 * jax.random.normal(ks[14], (COUT,), jnp.float32)
    v1 = jnp.abs(1.0 + 0.1 * jax.random.normal(ks[15], (PLANE,), jnp.float32))
    v2 = jnp.ones((PLANE,), jnp.float32) * 0.9
    v3 = jnp.ones((COUT,), jnp.float32) * 1.1

    s1, b1 = _bn_scale_shift(b1c, g1, be1, m1, v1)
    s2, b2 = _bn_scale_shift(b2c, g2, be2, m2, v2)
    s3, b3 = _bn_scale_shift(b3c, g3, be3, m3, v3)

    # channel-major weights; BN scale folded in (free, wrapper side)
    w1_cm = w1_pt[:, :, 0, 0] * s1[:, None]                     # (PLANE, CIN)
    w2_cm = (jnp.transpose(w2_pt, (0, 2, 3, 1)).reshape(PLANE, K2)
             * s2[:, None])                                     # (PLANE, 72)
    w3_cm = w3_pt[:, :, 0, 0] * s3[:, None]                     # (COUT, PLANE)

    # Pack into one bf16 weight slab (16-row aligned) + one f32 bias slab.
    wslab = jnp.zeros((WSLAB_ROWS, NHW), jnp.float32)
    wslab = wslab.at[W1_ROW:W1_ROW + PLANE, 0:CIN].set(w1_cm)
    wslab = wslab.at[W2_ROW:W2_ROW + PLANE, 0:K2].set(w2_cm)
    wslab = wslab.at[W3_ROW:W3_ROW + COUT, 0:PLANE].set(w3_cm)
    wslab = wslab.astype(jnp.bfloat16)

    bslab = jnp.concatenate([
        jnp.broadcast_to(b1[:, None], (PLANE, NHW)),
        jnp.broadcast_to(b2[:, None], (PLANE, NHW)),
        jnp.broadcast_to(b3[:, None], (COUT, NHW)),
    ], axis=0).astype(jnp.float32)                              # (48, NHW)

    kernel_params = (wslab, bslab, make_tap_mask())
    pt_params = dict(w1_pt=w1_pt, w2_pt=w2_pt, w3_pt=w3_pt,
                     s1=s1, b1=b1, s2=s2, b2=b2, s3=s3, b3=b3)
    return kernel_params, pt_params


def reference_forward(x_nchw, p):
    """Pure-JAX reference mirroring the PyTorch module (inference BN, f32)."""
    x = jnp.transpose(x_nchw, (0, 2, 3, 1)).astype(jnp.float32)   # NHWC
    dn = ('NHWC', 'HWIO', 'NHWC')

    def conv(inp, w_pt, dil, pad):
        w = jnp.transpose(w_pt, (2, 3, 1, 0))                     # HWIO
        return jax.lax.conv_general_dilated(
            inp, w, window_strides=(1, 1),
            padding=[(pad, pad), (pad, pad)],
            rhs_dilation=(dil, dil), dimension_numbers=dn)

    o = conv(x, p['w1_pt'], 1, 0)
    o = jnp.maximum(o * p['s1'] + p['b1'], 0.0)
    o = conv(o, p['w2_pt'], ATROUS, PAD)
    o = jnp.maximum(o * p['s2'] + p['b2'], 0.0)
    o = conv(o, p['w3_pt'], 1, 0)
    o = o * p['s3'] + p['b3']
    o = o + x
    return jnp.transpose(o, (0, 3, 1, 2))


if __name__ == "__main__":
    key = jax.random.PRNGKey(0)
    kx, kp = jax.random.split(key)
    x = jax.random.normal(kx, (N, CIN, H, W), jnp.float32)        # NCHW input
    kernel_params, pt_params = make_params(kp)

    out = bottleneck_forward(x, *kernel_params)
    out = jax.block_until_ready(out)

    ref = reference_forward(x, pt_params)
    assert out.shape == (N, COUT, H, W)
    # Tolerance widened vs the all-f32 version because matmul operands are bf16.
    assert jnp.allclose(out, ref, atol=2e-2, rtol=2e-2), "mismatch vs reference"
    print("KERNEL_OK")
</pallas_src>

<mosaic_0001>
module attributes {stable_mosaic.version = 11 : i64} {
  func.func @bottleneck_kernel(%arg0: memref<32x128xf32, #tpu.memory_space<vmem>>, %arg1: memref<64x128xbf16, #tpu.memory_space<vmem>>, %arg2: memref<48x128xf32, #tpu.memory_space<vmem>>, %arg3: memref<72x128xf32, #tpu.memory_space<vmem>>, %arg4: memref<32x128xf32, #tpu.memory_space<vmem>>, %arg5: memref<72x128xf32, #tpu.memory_space<vmem>>) attributes {dimension_semantics = [], scalar_prefetch = 0 : i64, scratch_operands = 1 : i64, tpu.core_type = #tpu.core_type<tc>} {
    %c0 = arith.constant 0 : index
    %c0_0 = arith.constant 0 : index
    %0 = vector.load %arg0[%c0, %c0_0] : memref<32x128xf32, #tpu.memory_space<vmem>>, vector<32x128xf32>
    %c0_1 = arith.constant 0 : index
    %c0_2 = arith.constant 0 : index
    %1 = vector.load %arg1[%c0_1, %c0_2] : memref<64x128xbf16, #tpu.memory_space<vmem>>, vector<8x32xbf16>
    %2 = arith.truncf %0 : vector<32x128xf32> to vector<32x128xbf16>
    %cst = arith.constant dense<0.000000e+00> : vector<8x128xf32>
    %3 = tpu.matmul %1, %2, %cst {dimension_numbers = #tpu.dot_dimension_numbers<[1], [0], [0], [1], [0, 0, 1, 1], [], []>} : vector<8x32xbf16>, vector<32x128xbf16>, vector<8x128xf32> -> vector<8x128xf32>
    %c0_3 = arith.constant 0 : index
    %c0_4 = arith.constant 0 : index
    %4 = vector.load %arg2[%c0_3, %c0_4] : memref<48x128xf32, #tpu.memory_space<vmem>>, vector<8x128xf32>
    %5 = arith.addf %3, %4 : vector<8x128xf32>
    %cst_5 = arith.constant 0.000000e+00 : f32
    %6 = vector.broadcast %cst_5 : f32 to vector<8x128xf32>
    %7 = arith.maximumf %5, %6 : vector<8x128xf32>
    %c9_i32 = arith.constant 9 : i32
    %8 = tpu.dynamic_rotate %7 by %c9_i32 dim 1 : vector<8x128xf32>, i32 -> vector<8x128xf32>
    %c0_6 = arith.constant 0 : index
    %c0_7 = arith.constant 0 : index
    %9 = vector.load %arg5[%c0_6, %c0_7] : memref<72x128xf32, #tpu.memory_space<vmem>>, vector<8x128xf32>
    tpu.vector_store %arg5[%c0_6, %c0_7], %8 {strides = array<i32>} : memref<72x128xf32, #tpu.memory_space<vmem>>, vector<8x128xf32>,
    %c8_i32 = arith.constant 8 : i32
    %10 = tpu.dynamic_rotate %7 by %c8_i32 dim 1 : vector<8x128xf32>, i32 -> vector<8x128xf32>
    %c8 = arith.constant 8 : index
    %c0_8 = arith.constant 0 : index
    %11 = vector.load %arg5[%c8, %c0_8] : memref<72x128xf32, #tpu.memory_space<vmem>>, vector<8x128xf32>
    tpu.vector_store %arg5[%c8, %c0_8], %10 {strides = array<i32>} : memref<72x128xf32, #tpu.memory_space<vmem>>, vector<8x128xf32>,
    %c7_i32 = arith.constant 7 : i32
    %12 = tpu.dynamic_rotate %7 by %c7_i32 dim 1 : vector<8x128xf32>, i32 -> vector<8x128xf32>
    %c16 = arith.constant 16 : index
    %c0_9 = arith.constant 0 : index
    %13 = vector.load %arg5[%c16, %c0_9] : memref<72x128xf32, #tpu.memory_space<vmem>>, vector<8x128xf32>
    tpu.vector_store %arg5[%c16, %c0_9], %12 {strides = array<i32>} : memref<72x128xf32, #tpu.memory_space<vmem>>, vector<8x128xf32>,
    %c1_i32 = arith.constant 1 : i32
    %14 = tpu.dynamic_rotate %7 by %c1_i32 dim 1 : vector<8x128xf32>, i32 -> vector<8x128xf32>
    %c24 = arith.constant 24 : index
    %c0_10 = arith.constant 0 : index
    %15 = vector.load %arg5[%c24, %c0_10] : memref<72x128xf32, #tpu.memory_space<vmem>>, vector<8x128xf32>
    tpu.vector_store %arg5[%c24, %c0_10], %14 {strides = array<i32>} : memref<72x128xf32, #tpu.memory_space<vmem>>, vector<8x128xf32>,
    %c32 = arith.constant 32 : index
    %c0_11 = arith.constant 0 : index
    %16 = vector.load %arg5[%c32, %c0_11] : memref<72x128xf32, #tpu.memory_space<vmem>>, vector<8x128xf32>
    tpu.vector_store %arg5[%c32, %c0_11], %7 {strides = array<i32>} : memref<72x128xf32, #tpu.memory_space<vmem>>, vector<8x128xf32>,
    %c127_i32 = arith.constant 127 : i32
    %17 = tpu.dynamic_rotate %7 by %c127_i32 dim 1 : vector<8x128xf32>, i32 -> vector<8x128xf32>
    %c40 = arith.constant 40 : index
    %c0_12 = arith.constant 0 : index
    %18 = vector.load %arg5[%c40, %c0_12] : memref<72x128xf32, #tpu.memory_space<vmem>>, vector<8x128xf32>
    tpu.vector_store %arg5[%c40, %c0_12], %17 {strides = array<i32>} : memref<72x128xf32, #tpu.memory_space<vmem>>, vector<8x128xf32>,
    %c121_i32 = arith.constant 121 : i32
    %19 = tpu.dynamic_rotate %7 by %c121_i32 dim 1 : vector<8x128xf32>, i32 -> vector<8x128xf32>
    %c48 = arith.constant 48 : index
    %c0_13 = arith.constant 0 : index
    %20 = vector.load %arg5[%c48, %c0_13] : memref<72x128xf32, #tpu.memory_space<vmem>>, vector<8x128xf32>
    tpu.vector_store %arg5[%c48, %c0_13], %19 {strides = array<i32>} : memref<72x128xf32, #tpu.memory_space<vmem>>, vector<8x128xf32>,
    %c120_i32 = arith.constant 120 : i32
    %21 = tpu.dynamic_rotate %7 by %c120_i32 dim 1 : vector<8x128xf32>, i32 -> vector<8x128xf32>
    %c56 = arith.constant 56 : index
    %c0_14 = arith.constant 0 : index
    %22 = vector.load %arg5[%c56, %c0_14] : memref<72x128xf32, #tpu.memory_space<vmem>>, vector<8x128xf32>
    tpu.vector_store %arg5[%c56, %c0_14], %21 {strides = array<i32>} : memref<72x128xf32, #tpu.memory_space<vmem>>, vector<8x128xf32>,
    %c119_i32 = arith.constant 119 : i32
    %23 = tpu.dynamic_rotate %7 by %c119_i32 dim 1 : vector<8x128xf32>, i32 -> vector<8x128xf32>
    %c64 = arith.constant 64 : index
    %c0_15 = arith.constant 0 : index
    %24 = vector.load %arg5[%c64, %c0_15] : memref<72x128xf32, #tpu.memory_space<vmem>>, vector<8x128xf32>
    tpu.vector_store %arg5[%c64, %c0_15], %23 {strides = array<i32>} : memref<72x128xf32, #tpu.memory_space<vmem>>, vector<8x128xf32>,
    %c0_16 = arith.constant 0 : index
    %c0_17 = arith.constant 0 : index
    %25 = vector.load %arg5[%c0_16, %c0_17] : memref<72x128xf32, #tpu.memory_space<vmem>>, vector<72x128xf32>
    %c0_18 = arith.constant 0 : index
    %c0_19 = arith.constant 0 : index
    %26 = vector.load %arg3[%c0_18, %c0_19] : memref<72x128xf32, #tpu.memory_space<vmem>>, vector<72x128xf32>
    %27 = arith.mulf %25, %26 : vector<72x128xf32>
    %28 = arith.truncf %27 : vector<72x128xf32> to vector<72x128xbf16>
    %c16_20 = arith.constant 16 : index
    %c0_21 = arith.constant 0 : index
    %29 = vector.load %arg1[%c16_20, %c0_21] : memref<64x128xbf16, #tpu.memory_space<vmem>>, vector<8x72xbf16>
    %cst_22 = arith.constant dense<0.000000e+00> : vector<8x128xf32>
    %30 = tpu.matmul %29, %28, %cst_22 {dimension_numbers = #tpu.dot_dimension_numbers<[1], [0], [0], [1], [0, 0, 1, 1], [], []>} : vector<8x72xbf16>, vector<72x128xbf16>, vector<8x128xf32> -> vector<8x128xf32>
    %c8_23 = arith.constant 8 : index
    %c0_24 = arith.constant 0 : index
    %31 = vector.load %arg2[%c8_23, %c0_24] : memref<48x128xf32, #tpu.memory_space<vmem>>, vector<8x128xf32>
    %32 = arith.addf %30, %31 : vector<8x128xf32>
    %cst_25 = arith.constant 0.000000e+00 : f32
    %33 = vector.broadcast %cst_25 : f32 to vector<8x128xf32>
    %34 = arith.maximumf %32, %33 : vector<8x128xf32>
    %c32_26 = arith.constant 32 : index
    %c0_27 = arith.constant 0 : index
    %35 = vector.load %arg1[%c32_26, %c0_27] : memref<64x128xbf16, #tpu.memory_space<vmem>>, vector<32x8xbf16>
    %36 = arith.truncf %34 : vector<8x128xf32> to vector<8x128xbf16>
    %cst_28 = arith.constant dense<0.000000e+00> : vector<32x128xf32>
    %37 = tpu.matmul %35, %36, %cst_28 {dimension_numbers = #tpu.dot_dimension_numbers<[1], [0], [0], [1], [0, 0, 1, 1], [], []>} : vector<32x8xbf16>, vector<8x128xbf16>, vector<32x128xf32> -> vector<32x128xf32>
    %c16_29 = arith.constant 16 : index
    %c0_30 = arith.constant 0 : index
    %38 = vector.load %arg2[%c16_29, %c0_30] : memref<48x128xf32, #tpu.memory_space<vmem>>, vector<32x128xf32>
    %39 = arith.addf %37, %38 : vector<32x128xf32>
    %40 = arith.addf %39, %0 : vector<32x128xf32>
    %c0_31 = arith.constant 0 : index
    %c0_32 = arith.constant 0 : index
    %41 = vector.load %arg4[%c0_31, %c0_32] : memref<32x128xf32, #tpu.memory_space<vmem>>, vector<32x128xf32>
    tpu.vector_store %arg4[%c0_31, %c0_32], %40 {strides = array<i32>} : memref<32x128xf32, #tpu.memory_space<vmem>>, vector<32x128xf32>,
    return
  }
}

</mosaic_0001>

<llo_original>
// kernel: tpu_custom_call.1
$region0: #{tpu_custom_call.1}
  #allocation0 [shape = 'u32[]', space=smem, size = 0x4, offset = 0x4, fixed_abs, tag = 'smem constant byte address 0x4 - core index']
  #allocation1 [shape = 'u32[144,128]{1,0:T(1,128)}', space=vmem, size = 0x12000, scoped, tag = 'internal scratch']
  #allocation2 [shape = 'f32[72,128]{1,0:T(8,128)}', space=vmem, size = 0x9000, scoped, tag = 'scratch operand']
  %s0 = inlined_call_operand.hbm [shape: f32[32,128], index: 0, kind: input, shape index: {}]
  %s1 = inlined_call_operand.hbm [shape: bf16[64,128], index: 1, kind: input, shape index: {}]
  %s2 = inlined_call_operand.hbm [shape: f32[48,128], index: 2, kind: input, shape index: {}]
  %s3 = inlined_call_operand.hbm [shape: f32[72,128], index: 3, kind: input, shape index: {}]
  %s4 = inlined_call_operand.hbm [shape: f32[32,128], index: 4, kind: output, shape index: {}]
  %s5 = sld [smem:[#allocation0]]
  $region42: #{tpu_custom_call.1} parent=0
    _
  %s7 = ssub.s32 1, %s5
  %s8 = scalar_select 0, %s7, %s5
  $region1: #{tpu_custom_call.1} parent=0
    #allocation3 [shape = 'u8[16384]{0}', space=vmem, size = 0x4000, scoped, tag = 'input window, operand 0, single buffered']
    #allocation4 [shape = 's32[1]{0}', space=sflag, size = 0x4, scoped, tag = 'scoped memory for tpu_custom_call.1']
    #allocation5 [shape = 's32[1]{0}', space=sflag, size = 0x4, scoped, tag = 'scoped memory for tpu_custom_call.1']
    #allocation6 [shape = 'u8[16384]{0}', space=vmem, size = 0x4000, scoped, tag = 'input window, operand 1, single buffered']
    #allocation7 [shape = 's32[1]{0}', space=sflag, size = 0x4, scoped, tag = 'scoped memory for tpu_custom_call.1']
    #allocation8 [shape = 'u8[24576]{0}', space=vmem, size = 0x6000, scoped, tag = 'input window, operand 2, single buffered']
    #allocation9 [shape = 'u8[36864]{0}', space=vmem, size = 0x9000, scoped, tag = 'input window, operand 3, single buffered']
    #allocation10 [shape = 's32[1]{0}', space=sflag, size = 0x4, scoped, tag = 'scoped memory for tpu_custom_call.1']
    #allocation11 [shape = 'u8[16384]{0}', space=vmem, size = 0x4000, scoped, tag = 'output window, operand 0, single buffered']
    %9 = vsyncpa [#allocation4], 0
    %10 = vsyncpa [#allocation7], 0
    %11 = vsyncpa [#allocation10], 0
    %12 = vsyncpa [#allocation5], 0
    // Predicated region
    $region2: #{tpu_custom_call.1} parent=1 // pred_check
      _
    $region3: #{tpu_custom_call.1} parent=1 // pred_check_branch
      %14 = sbr.rel (0) target = $region5
    $region4: #{tpu_custom_call.1} parent=1 // pred_region
      %s16 = ssub.s32 512, 512
      %17 = vsyncadd [#allocation4], %s16
      %s18 = sshll.u32 [#allocation3], 4
      %s19 = int_to_ptr.vmem [resolvable:$true] %s18
      %24 = dma.hbm_to_vmem [thread:$0]  %s0, 512, %s19, [#allocation4], 128, 128, 8
    $region5: #{tpu_custom_call.1} parent=1 // pred_fallthru
      _
    // Predicated region
    $region6: #{tpu_custom_call.1} parent=1 // pred_check
      _
    $region7: #{tpu_custom_call.1} parent=1 // pred_check_branch
      %26 = sbr.rel (0) target = $region9
    $region8: #{tpu_custom_call.1} parent=1 // pred_region
      %s28 = ssub.s32 512, 512
      %29 = vsyncadd [#allocation7], %s28
      %s30 = sshll.u32 [#allocation6], 4
      %s31 = int_to_ptr.vmem [resolvable:$true] %s30
      %36 = dma.hbm_to_vmem [thread:$0]  %s1, 512, %s31, [#allocation7], 64, 64, 4
    $region9: #{tpu_custom_call.1} parent=1 // pred_fallthru
      _
    // Predicated region
    $region10: #{tpu_custom_call.1} parent=1 // pred_check
      _
    $region11: #{tpu_custom_call.1} parent=1 // pred_check_branch
      %38 = sbr.rel (0) target = $region13
    $region12: #{tpu_custom_call.1} parent=1 // pred_region
      %s40 = ssub.s32 768, 768
      %41 = vsyncadd [#allocation7], %s40
      %s42 = sshll.u32 [#allocation8], 4
      %s43 = int_to_ptr.vmem [resolvable:$true] %s42
      %48 = dma.hbm_to_vmem [thread:$0]  %s2, 768, %s43, [#allocation7], 128, 128, 8
    $region13: #{tpu_custom_call.1} parent=1 // pred_fallthru
      _
    // Predicated region
    $region14: #{tpu_custom_call.1} parent=1 // pred_check
      _
    $region15: #{tpu_custom_call.1} parent=1 // pred_check_branch
      %50 = sbr.rel (0) target = $region17
    $region16: #{tpu_custom_call.1} parent=1 // pred_region
      %s52 = ssub.s32 1152, 1152
      %53 = vsyncadd [#allocation10], %s52
      %s54 = sshll.u32 [#allocation9], 4
      %s55 = int_to_ptr.vmem [resolvable:$true] %s54
      %60 = dma.hbm_to_vmem [thread:$0]  %s3, 1152, %s55, [#allocation10], 128, 128, 8
    $region17: #{tpu_custom_call.1} parent=1 // pred_fallthru
      _
    // Predicated region
    $region18: #{tpu_custom_call.1} parent=1 // pred_check
      _
    $region19: #{tpu_custom_call.1} parent=1 // pred_check_branch
      %62 = sbr.rel (0) target = $region21
    $region20: #{tpu_custom_call.1} parent=1 // pred_region
      %63 = dma.done [#allocation4], 512
    $region21: #{tpu_custom_call.1} parent=1 // pred_fallthru
      _
    // Predicated region
    $region22: #{tpu_custom_call.1} parent=1 // pred_check
      _
    $region23: #{tpu_custom_call.1} parent=1 // pred_check_branch
      %65 = sbr.rel (0) target = $region25
    $region24: #{tpu_custom_call.1} parent=1 // pred_region
      %66 = dma.done [#allocation7], 512
    $region25: #{tpu_custom_call.1} parent=1 // pred_fallthru
      _
    // Predicated region
    $region26: #{tpu_custom_call.1} parent=1 // pred_check
      _
    $region27: #{tpu_custom_call.1} parent=1 // pred_check_branch
      %68 = sbr.rel (0) target = $region29
    $region28: #{tpu_custom_call.1} parent=1 // pred_region
      %69 = dma.done [#allocation7], 768
    $region29: #{tpu_custom_call.1} parent=1 // pred_fallthru
      _
    // Predicated region
    $region30: #{tpu_custom_call.1} parent=1 // pred_check
      _
    $region31: #{tpu_custom_call.1} parent=1 // pred_check_branch
      %71 = sbr.rel (0) target = $region33
    $region32: #{tpu_custom_call.1} parent=1 // pred_region
      %72 = dma.done [#allocation10], 1152
    $region33: #{tpu_custom_call.1} parent=1 // pred_fallthru
      _
    %v74 = vld [vmem:[#allocation3] sm:$0xff]
    %v75 = vld [vmem:[#allocation3 + $0x8] sm:$0xff]
    %v76 = vld [vmem:[#allocation3 + $0x10] sm:$0xff]
    %v77 = vld [vmem:[#allocation3 + $0x18] sm:$0xff]
    %v78 = vld [vmem:[#allocation6] sm:$0xf]
    %v79 = vpack.c.bf16 %v75, %v74
    %v80 = vpack.c.bf16 %v77, %v76
    %v81 = vld [vmem:[#allocation8] sm:$0xff]
    %vm82 = vcmask 261120
    %v84 = vsel %vm82, %v78, 0
    %86 = vmatprep.subr.bf16.mxu0 0
    %87 = vmatpush1.bf16.msra.mxu0 0
    %88 = vmatprep.subr.bf16.mxu0 0
    %89 = vmatpush1.bf16.msra.mxu0 0
    %90 = vmatprep.subr.bf16.mxu0 0
    %91 = vmatpush1.bf16.msra.mxu0 0
    %92 = vmatprep.subr.bf16.mxu0 0
    %93 = vmatpush1.bf16.msra.mxu0 0
    %94 = vmatprep.subr.bf16.mxu0 0
    %95 = vmatpush1.bf16.msra.mxu0 0
    %96 = vmatprep.subr.bf16.mxu0 0
    %97 = vmatpush1.bf16.msra.mxu0 0
    %98 = vmatprep.subr.bf16.mxu0 0
    %99 = vmatpush1.bf16.msra.mxu0 %v80
    %100 = vmatprep.subr.bf16.mxu0 0
    %101 = vmatpush1.bf16.msra.mxu0 %v79
    %102 = vmatprep.subr.bf16.mxu0 0
    %103 = vmatpush2.bf16.msra.mxu0 0
    %104 = vmatprep.subr.bf16.mxu0 0
    %105 = vmatpush2.bf16.msra.mxu0 0
    %106 = vmatprep.subr.bf16.mxu0 0
    %107 = vmatpush2.bf16.msra.mxu0 0
    %108 = vmatprep.subr.bf16.mxu0 0
    %109 = vmatpush2.bf16.msra.mxu0 0
    %110 = vmatprep.subr.bf16.mxu0 0
    %111 = vmatpush2.bf16.msra.mxu0 0
    %112 = vmatprep.subr.bf16.mxu0 0
    %113 = vmatpush2.bf16.msra.mxu0 0
    %114 = vmatprep.subr.bf16.mxu0 0
    %115 = vmatpush2.bf16.msra.mxu0 0
    %116 = vmatprep.subr.bf16.mxu0 0
    %117 = vmatpush2.bf16.msra.mxu0 0
    %118 = vmatprep.mubr.bf16.mxu0 0
    %119 = vmatmul.mubr.bf16.gmra.mxu0 %v84
    %v120 = vpop.f32.mrf.mxu0
    %v121 = vadd.f32 %v81, %v120
    %v122 = vpop.f32.mrf.mxu0
    %v123 = vpop.f32.mrf.mxu0
    %v124 = vpop.f32.mrf.mxu0
    %125 = vdwg.mxu0
    %v126 = vmax.f32 %v121, 0.0
    %127 = vrot.lane.b32.xlu0 %v126, 9
    %v128 = vpop.permute.xlu0 %127
    %129 = vst [vmem:[#allocation2] sm:$0xff] %v128
    %130 = vrot.lane.b32.xlu0 %v126, 8
    %v131 = vpop.permute.xlu0 %130
    %132 = vst [vmem:[#allocation2 + $0x8] sm:$0xff] %v131
    %133 = vrot.lane.b32.xlu0 %v126, 7
    %v134 = vpop.permute.xlu0 %133
    %135 = vst [vmem:[#allocation2 + $0x10] sm:$0xff] %v134
    %136 = vrot.lane.b32.xlu0 %v126, 1
    %v137 = vpop.permute.xlu0 %136
    %138 = vst [vmem:[#allocation2 + $0x18] sm:$0xff] %v137
    %139 = vst [vmem:[#allocation2 + $0x20] sm:$0xff] %v126
    %140 = vrot.lane.b32.xlu0 %v126, 127
    %v141 = vpop.permute.xlu0 %140
    %142 = vst [vmem:[#allocation2 + $0x28] sm:$0xff] %v141
    %143 = vrot.lane.b32.xlu0 %v126, 121
    %v144 = vpop.permute.xlu0 %143
    %145 = vst [vmem:[#allocation2 + $0x30] sm:$0xff] %v144
    %146 = vrot.lane.b32.xlu0 %v126, 120
    %v147 = vpop.permute.xlu0 %146
    %148 = vst [vmem:[#allocation2 + $0x38] sm:$0xff] %v147
    %149 = vrot.lane.b32.xlu0 %v126, 119
    %v150 = vpop.permute.xlu0 %149
    %151 = vst [vmem:[#allocation2 + $0x40] sm:$0xff] %v150
    %v152 = vld [vmem:[#allocation2] sm:$0xff]
    %v153 = vld [vmem:[#allocation2 + $0x8] sm:$0xff]
    %v154 = vld [vmem:[#allocation2 + $0x10] sm:$0xff]
    %v155 = vld [vmem:[#allocation2 + $0x18] sm:$0xff]
    %v156 = vld [vmem:[#allocation2 + $0x20] sm:$0xff]
    %v157 = vld [vmem:[#allocation2 + $0x28] sm:$0xff]
    %v158 = vld [vmem:[#allocation2 + $0x30] sm:$0xff]
    %v159 = vld [vmem:[#allocation2 + $0x38] sm:$0xff]
    %v160 = vld [vmem:[#allocation2 + $0x40] sm:$0xff]
    %v161 = vld [vmem:[#allocation9] sm:$0xff]
    %v162 = vld [vmem:[#allocation9 + $0x8] sm:$0xff]
    %v163 = vld [vmem:[#allocation9 + $0x10] sm:$0xff]
    %v164 = vld [vmem:[#allocation9 + $0x18] sm:$0xff]
    %v165 = vld [vmem:[#allocation9 + $0x20] sm:$0xff]
    %v166 = vld [vmem:[#allocation9 + $0x28] sm:$0xff]
    %v167 = vld [vmem:[#allocation9 + $0x30] sm:$0xff]
    %v168 = vld [vmem:[#allocation9 + $0x38] sm:$0xff]
    %v169 = vld [vmem:[#allocation9 + $0x40] sm:$0xff]
    %v170 = vmul.f32 %v152, %v161
    %v171 = vmul.f32 %v153, %v162
    %v172 = vmul.f32 %v154, %v163
    %v173 = vmul.f32 %v155, %v164
    %v174 = vmul.f32 %v156, %v165
    %v175 = vmul.f32 %v157, %v166
    %v176 = vmul.f32 %v158, %v167
    %v177 = vmul.f32 %v159, %v168
    %v178 = vmul.f32 %v160, %v169
    %v179 = vpack.c.bf16 %v171, %v170
    %v180 = vpack.c.bf16 %v173, %v172
    %v181 = vpack.c.bf16 %v175, %v174
    %v182 = vpack.c.bf16 %v177, %v176
    %v183 = vpack.c.bf16 %v178, %v178
    %v184 = vld [vmem:[#allocation6 + $0x8] sm:$0xf]
    %v185 = vld [vmem:[#allocation8 + $0x8] sm:$0xff]
    %vm186 = vcmask 588800
    %v188 = vsel %vm186, %v184, 0
    %vm190 = vcmask 1043456
    %v192 = vsel %vm190, %v183, 0
    %194 = vmatprep.subr.bf16.mxu0 0
    %195 = vmatpush1.bf16.msra.mxu0 0
    %196 = vmatprep.subr.bf16.mxu0 0
    %197 = vmatpush1.bf16.msra.mxu0 0
    %198 = vmatprep.subr.bf16.mxu0 0
    %199 = vmatpush1.bf16.msra.mxu0 0
    %200 = vmatprep.subr.bf16.mxu0 0
    %201 = vmatpush1.bf16.msra.mxu0 %v192
    %202 = vmatprep.subr.bf16.mxu0 0
    %203 = vmatpush1.bf16.msra.mxu0 %v182
    %204 = vmatprep.subr.bf16.mxu0 0
    %205 = vmatpush1.bf16.msra.mxu0 %v181
    %206 = vmatprep.subr.bf16.mxu0 0
    %207 = vmatpush1.bf16.msra.mxu0 %v180
    %208 = vmatprep.subr.bf16.mxu0 0
    %209 = vmatpush1.bf16.msra.mxu0 %v179
    %210 = vmatprep.subr.bf16.mxu0 0
    %211 = vmatpush2.bf16.msra.mxu0 0
    %212 = vmatprep.subr.bf16.mxu0 0
    %213 = vmatpush2.bf16.msra.mxu0 0
    %214 = vmatprep.subr.bf16.mxu0 0
    %215 = vmatpush2.bf16.msra.mxu0 0
    %216 = vmatprep.subr.bf16.mxu0 0
    %217 = vmatpush2.bf16.msra.mxu0 0
    %218 = vmatprep.subr.bf16.mxu0 0
    %219 = vmatpush2.bf16.msra.mxu0 0
    %220 = vmatprep.subr.bf16.mxu0 0
    %221 = vmatpush2.bf16.msra.mxu0 0
    %222 = vmatprep.subr.bf16.mxu0 0
    %223 = vmatpush2.bf16.msra.mxu0 0
    %224 = vmatprep.subr.bf16.mxu0 0
    %225 = vmatpush2.bf16.msra.mxu0 0
    %226 = vmatprep.mubr.bf16.mxu0 0
    %227 = vmatmul.mubr.bf16.gmra.mxu0 %v188
    %v228 = vpop.f32.mrf.mxu0
    %v229 = vadd.f32 %v185, %v228
    %v230 = vpop.f32.mrf.mxu0
    %v231 = vpop.f32.mrf.mxu0
    %v232 = vpop.f32.mrf.mxu0
    %233 = vdwg.mxu0
    %v234 = vmax.f32 %v229, 0.0
    %v235 = vld [vmem:[#allocation6 + $0x10] sm:$0xf]
    %v236 = vld [vmem:[#allocation6 + $0x14] sm:$0xf]
    %v237 = vld [vmem:[#allocation6 + $0x18] sm:$0xf]
    %v238 = vld [vmem:[#allocation6 + $0x1c] sm:$0xf]
    %v239 = vpack.c.bf16 %v234, %v234
    %v240 = vld [vmem:[#allocation8 + $0x10] sm:$0xff]
    %v241 = vld [vmem:[#allocation8 + $0x18] sm:$0xff]
    %v242 = vld [vmem:[#allocation8 + $0x20] sm:$0xff]
    %v243 = vld [vmem:[#allocation8 + $0x28] sm:$0xff]
    %v248 = vunpack.c.l.b16 %v235
    %v249 = vunpack.c.l.b16 %v236
    %v250 = vunpack.c.l.b16 %v237
    %v251 = vunpack.c.l.b16 %v238
    %v252 = vpack.c.b16 %v249, %v248
    %v253 = vpack.c.b16 %v251, %v250
    %vm254 = vcmask 64512
    %v256 = vsel %vm254, %v252, 0
    %v259 = vsel %vm254, %v253, 0
    %v262 = vsel %vm190, %v239, 0
    %264 = vmatprep.subr.bf16.mxu0 0
    %265 = vmatpush1.bf16.msra.mxu0 0
    %266 = vmatprep.subr.bf16.mxu0 0
    %267 = vmatpush1.bf16.msra.mxu0 0
    %268 = vmatprep.subr.bf16.mxu0 0
    %269 = vmatpush1.bf16.msra.mxu0 0
    %270 = vmatprep.subr.bf16.mxu0 0
    %271 = vmatpush1.bf16.msra.mxu0 0
    %272 = vmatprep.subr.bf16.mxu0 0
    %273 = vmatpush1.bf16.msra.mxu0 0
    %274 = vmatprep.subr.bf16.mxu0 0
    %275 = vmatpush1.bf16.msra.mxu0 0
    %276 = vmatprep.subr.bf16.mxu0 0
    %277 = vmatpush1.bf16.msra.mxu0 0
    %278 = vmatprep.subr.bf16.mxu0 0
    %279 = vmatpush1.bf16.msra.mxu0 %v262
    %280 = vmatprep.subr.bf16.mxu0 0
    %281 = vmatpush2.bf16.msra.mxu0 0
    %282 = vmatprep.subr.bf16.mxu0 0
    %283 = vmatpush2.bf16.msra.mxu0 0
    %284 = vmatprep.subr.bf16.mxu0 0
    %285 = vmatpush2.bf16.msra.mxu0 0
    %286 = vmatprep.subr.bf16.mxu0 0
    %287 = vmatpush2.bf16.msra.mxu0 0
    %288 = vmatprep.subr.bf16.mxu0 0
    %289 = vmatpush2.bf16.msra.mxu0 0
    %290 = vmatprep.subr.bf16.mxu0 0
    %291 = vmatpush2.bf16.msra.mxu0 0
    %292 = vmatprep.subr.bf16.mxu0 0
    %293 = vmatpush2.bf16.msra.mxu0 0
    %294 = vmatprep.subr.bf16.mxu0 0
    %295 = vmatpush2.bf16.msra.mxu0 0
    %296 = vmatprep.mubr.bf16.mxu0 0
    %297 = vmatmul.mubr.bf16.gmra.mxu0 %v256
    %v298 = vpop.f32.mrf.mxu0
    %v299 = vadd.f32 %v240, %v298
    %v300 = vpop.f32.mrf.mxu0
    %v301 = vpop.f32.mrf.mxu0
    %v302 = vadd.f32 %v241, %v301
    %v303 = vpop.f32.mrf.mxu0
    %304 = vmatprep.mubr.bf16.mxu0 0
    %305 = vmatmul.mubr.bf16.gmra.mxu0 %v259
    %v306 = vpop.f32.mrf.mxu0
    %v307 = vadd.f32 %v242, %v306
    %v308 = vpop.f32.mrf.mxu0
    %v309 = vpop.f32.mrf.mxu0
    %v310 = vadd.f32 %v243, %v309
    %v311 = vpop.f32.mrf.mxu0
    %312 = vdwg.mxu0
    %v313 = vadd.f32 %v299, %v74
    %v314 = vadd.f32 %v302, %v75
    %v315 = vadd.f32 %v307, %v76
    %v316 = vadd.f32 %v310, %v77
    %317 = vst [vmem:[#allocation11] sm:$0xff] %v313
    %318 = vst [vmem:[#allocation11 + $0x8] sm:$0xff] %v314
    %319 = vst [vmem:[#allocation11 + $0x10] sm:$0xff] %v315
    %320 = vst [vmem:[#allocation11 + $0x18] sm:$0xff] %v316
    // Predicated region
    $region34: #{tpu_custom_call.1} parent=1 // pred_check
      _
    $region35: #{tpu_custom_call.1} parent=1 // pred_check_branch
      %322 = sbr.rel (0) target = $region37
    $region36: #{tpu_custom_call.1} parent=1 // pred_region
      %s324 = ssub.s32 512, 512
      %325 = vsyncadd [#allocation5], %s324
      %s326 = sshll.u32 [#allocation11], 4
      %s327 = int_to_ptr.vmem [resolvable:$true] %s326
      %332 = dma.vmem_to_hbm [thread:$0]  %s327, 512, %s4, [#allocation5], 128, 128, 8
    $region37: #{tpu_custom_call.1} parent=1 // pred_fallthru
      _
    // Predicated region
    $region38: #{tpu_custom_call.1} parent=1 // pred_check
      _
    $region39: #{tpu_custom_call.1} parent=1 // pred_check_branch
      %334 = sbr.rel (0) target = $region41
    $region40: #{tpu_custom_call.1} parent=1 // pred_region
      %335 = dma.done [#allocation5], 512
    $region41: #{tpu_custom_call.1} parent=1 // pred_fallthru
      _
    %336 = vsyncpa [#allocation4], 1
    %337 = vsyncpa [#allocation7], 1
    %338 = vsyncpa [#allocation10], 1
    %339 = vsyncpa [#allocation5], 1

</llo_original>
